<compile_context>
chip_gen: v7x
topology: tpu7x:2x2x1
jax: 0.10.0
libtpu: 0.0.40
codegen_flags: <defaults>
</compile_context>

<pallas_src>
import jax
import jax.numpy as jnp
from jax.experimental import pallas as pl
from jax.experimental.pallas import tpu as pltpu

# ----------------------- configuration (small shapes) -----------------------
C = 3                   # image channels
H = W = 16              # spatial size
HW = H * W
K = 16                  # number of mask proposals
N_TEXT = 6              # number of noun classes
D = 32                  # CLIP embedding dim (text_projection.shape[-1])
TRANSFORMER_WIDTH = 64  # clip_model.transformer.width (synthetic)
MASK_THR = 0.5
TEMPERATURE = 100.0
NORM_EPS = 1e-24        # guards rsqrt for empty-mask rows

CLIP_PIXEL_MEAN = (0.48145466, 0.4578275, 0.40821073)
CLIP_PIXEL_STD = (0.26862954, 0.26130258, 0.27577711)


# --------------------------------- kernel -----------------------------------
def _fused_adapter_kernel(fill_ref, inv_std_ref,
                          image_ref, mask_ref, wv_ref, bias_ref, text_ref,
                          logits_ref, valid_ref):
    """Fused valid-flag + masked image features + text norm + sim logits.

    fill/inv_std : SMEM [C]         f32
    image_ref    : VMEM [C, HW]     f32 (channels on sublanes, pixels on lanes)
    mask_ref     : VMEM [K, HW]     f32
    wv_ref       : VMEM [C, D, HW]  f32 (surrogate visual projection, lane-dense)
    bias_ref     : VMEM [1, D]      f32 (param-only bias, precomputed)
    text_ref     : VMEM [N+1, D]    f32 (raw object text ++ non_object emb.)
    logits_ref   : VMEM [K, N+1]    f32 output
    valid_ref    : VMEM [K, 1]      i32 output (1 iff mask non-empty)
    """
    # ---- 1) valid flag --------------------------------------------------
    bin_m = (mask_ref[...] > MASK_THR).astype(jnp.float32)          # [K, HW]
    cnt = jnp.sum(bin_m, axis=-1, keepdims=True)                    # [K, 1]
    valid_ref[...] = (cnt > 0.0).astype(jnp.int32)

    # ---- 2) mask-independent effective projection (lane-dense [D, HW]) --
    # masked-fill + normalize + per-channel projection collapse to:
    #   feat = bin_m @ Weff^T + bias,
    #   Weff[d,p] = sum_c ((img[c,p]-fill_c)*inv_std_c) * wv[c,d,p]
    weff = jnp.zeros((D, HW), jnp.float32)
    for c in range(C):  # static C == 3, unrolled
        img_c = image_ref[pl.ds(c, 1), :]                           # [1, HW]
        scale_c = (img_c - fill_ref[c]) * inv_std_ref[c]            # [1, HW]
        weff = weff + scale_c * wv_ref[c]                           # [D, HW]

    # ---- 3) image features: one MXU matmul (contract HW lanes) + L2 norm
    feat = jax.lax.dot_general(
        bin_m, weff,
        dimension_numbers=(((1,), (1,)), ((), ())),
        preferred_element_type=jnp.float32) + bias_ref[...]         # [K, D]
    feat_n = feat * jax.lax.rsqrt(
        jnp.maximum(jnp.sum(feat * feat, axis=-1, keepdims=True), NORM_EPS))

    # ---- 4) text normalization (once) + sim logits -----------------------
    txt = text_ref[...]
    txt_n = txt * jax.lax.rsqrt(
        jnp.maximum(jnp.sum(txt * txt, axis=-1, keepdims=True), NORM_EPS))
    logits = jax.lax.dot_general(
        feat_n, txt_n,
        dimension_numbers=(((1,), (1,)), ((), ())),
        preferred_element_type=jnp.float32)
    logits_ref[...] = TEMPERATURE * logits


# -------------------------------- wrapper ------------------------------------
def maskformer_clip_adapter_forward(params, image, text_ids, mask):
    """image: [C, H, W] f32, mask: [K, H, W] f32, text_ids: [N] i32.

    Returns (sim_logits [K, N+1], valid_flag [K] bool) — matching
    MaskFormerClipAdapter.forward(image, text, mask).
    """
    # _preprocess_image: cast image to mask dtype
    image = image.astype(mask.dtype)
    mask2d = mask.reshape(mask.shape[0], -1)          # [K, HW]
    image_pc = image.reshape(C, -1)                   # [C, HW] — lane-dense

    # get_text_features glue: object text feats ++ non_object_embedding
    object_text = params["text_embed_table"][text_ids]                # [N, D]
    text_raw = jnp.concatenate(
        [object_text, params["non_object_embedding"]], axis=0)        # [N+1, D]

    k = mask2d.shape[0]
    n1 = text_raw.shape[0]
    logits, valid = pl.pallas_call(
        _fused_adapter_kernel,
        out_shape=(jax.ShapeDtypeStruct((k, n1), jnp.float32),
                   jax.ShapeDtypeStruct((k, 1), jnp.int32)),
        in_specs=[
            pl.BlockSpec(memory_space=pltpu.MemorySpace.SMEM),   # mask_fill [C]
            pl.BlockSpec(memory_space=pltpu.MemorySpace.SMEM),   # inv_std   [C]
            pl.BlockSpec(memory_space=pltpu.MemorySpace.VMEM),   # image [C, HW]
            pl.BlockSpec(memory_space=pltpu.MemorySpace.VMEM),   # mask  [K, HW]
            pl.BlockSpec(memory_space=pltpu.MemorySpace.VMEM),   # wv [C, D, HW]
            pl.BlockSpec(memory_space=pltpu.MemorySpace.VMEM),   # bias [1, D]
            pl.BlockSpec(memory_space=pltpu.MemorySpace.VMEM),   # text [N+1, D]
        ],
        out_specs=(pl.BlockSpec(memory_space=pltpu.MemorySpace.VMEM),
                   pl.BlockSpec(memory_space=pltpu.MemorySpace.VMEM)),
    )(params["mask_fill"], params["inv_std"],
      image_pc, mask2d, params["visual_proj"], params["proj_bias"], text_raw)

    return logits, valid[:, 0].astype(jnp.bool_)


# ----------------------------- pure-JAX reference ----------------------------
def _reference_forward(params, image, text_ids, mask):
    """Straight transcription of the original per-channel math (no fusion)."""
    hp = jax.lax.Precision.HIGHEST
    image = image.astype(mask.dtype)
    mask2d = mask.reshape(mask.shape[0], -1)
    image2d = image.reshape(C, -1)
    bin_m = (mask2d > MASK_THR).astype(jnp.float32)
    valid = jnp.sum(bin_m, axis=-1) > 0
    feat = jnp.zeros((mask2d.shape[0], D), jnp.float32)
    for c in range(C):
        x_c = bin_m * image2d[c][None, :] + (1.0 - bin_m) * params["mask_fill"][c]
        x_c = (x_c - params["pixel_mean"][c]) / params["pixel_std"][c]
        # visual_proj is stored [C, D, HW]; the classic [HW, D] view is its .T
        feat = feat + jnp.dot(x_c, params["visual_proj"][c].T, precision=hp)
    feat = feat / jnp.linalg.norm(feat, axis=-1, keepdims=True)
    object_text = params["text_embed_table"][text_ids]
    text_raw = jnp.concatenate(
        [object_text, params["non_object_embedding"]], axis=0)
    text_n = text_raw / jnp.linalg.norm(text_raw, axis=-1, keepdims=True)
    logits = TEMPERATURE * jnp.dot(feat, text_n.T, precision=hp)
    return logits, valid


# ----------------------------- module surrogate -------------------------------
def init_params(key):
    k1, k2, k3 = jax.random.split(key, 3)
    pixel_mean = jnp.asarray(CLIP_PIXEL_MEAN, jnp.float32) * 255.0
    pixel_std = jnp.asarray(CLIP_PIXEL_STD, jnp.float32) * 255.0
    # mask_fill == 'mean'  ->  [255 * c for c in CLIP.PIXEL_MEAN]
    mask_fill = jnp.asarray([255.0 * c for c in CLIP_PIXEL_MEAN], jnp.float32)
    # surrogate for clip_model.visual (masked region encoder) — stored
    # lane-dense as [C, D, HW] so the long HW axis sits on lanes.
    visual_proj = (jax.random.normal(k1, (C, D, HW), jnp.float32)
                   * (C * HW) ** -0.5)
    # ---- derived buffers hoisted out of the kernel (param-only math) ----
    inv_std = 1.0 / pixel_std                                       # [C]
    coef = (mask_fill - pixel_mean) * inv_std                       # [C]
    proj_bias = jnp.einsum("c,cdp->d", coef, visual_proj)[None, :]  # [1, D]
    return {
        "visual_proj": visual_proj,
        # surrogate for prompt_learner(noun_list, clip_model) outputs
        "text_embed_table": jax.random.normal(k2, (N_TEXT, D), jnp.float32),
        # nn.Parameter(torch.empty(1, D)), normal_ with std = width^-0.5
        "non_object_embedding": jax.random.normal(k3, (1, D), jnp.float32)
                                * TRANSFORMER_WIDTH ** -0.5,
        # registered buffers: 255 * CLIP pixel statistics
        "pixel_mean": pixel_mean,
        "pixel_std": pixel_std,
        "mask_fill": mask_fill,
        # precomputed (kernel-side) buffers
        "inv_std": inv_std,
        "proj_bias": proj_bias,
    }


# ----------------------------------- main -------------------------------------
if __name__ == "__main__":
    key = jax.random.PRNGKey(0)
    pkey, ikey, mkey = jax.random.split(key, 3)

    params = init_params(pkey)
    image = jax.random.uniform(ikey, (C, H, W), jnp.float32, 0.0, 255.0)
    mask = jax.random.uniform(mkey, (K, H, W), jnp.float32)
    text_ids = jnp.arange(N_TEXT, dtype=jnp.int32)

    forward = jax.jit(maskformer_clip_adapter_forward)
    logits, valid_flag = forward(params, image, text_ids, mask)
    jax.block_until_ready((logits, valid_flag))

    assert logits.shape == (K, N_TEXT + 1), logits.shape
    assert logits.dtype == jnp.float32
    assert valid_flag.shape == (K,), valid_flag.shape
    assert valid_flag.dtype == jnp.bool_

    # correctness vs. a pure-JAX transcription of the original module math.
    # Tolerance absorbs MXU precision-path / summation-order differences while
    # still catching algebra bugs (logit magnitudes are O(10..100)).
    ref_logits, ref_valid = _reference_forward(params, image, text_ids, mask)
    assert bool(jnp.array_equal(valid_flag, ref_valid))
    assert bool(jnp.allclose(logits, ref_logits, rtol=2e-2, atol=0.5)), (
        float(jnp.max(jnp.abs(logits - ref_logits))))

    print("KERNEL_OK")
</pallas_src>

<mosaic_0001>
module attributes {stable_mosaic.version = 11 : i64} {
  func.func @_fused_adapter_kernel(%arg0: memref<3xf32, #tpu.memory_space<smem>>, %arg1: memref<3xf32, #tpu.memory_space<smem>>, %arg2: memref<3x256xf32, #tpu.memory_space<vmem>>, %arg3: memref<16x256xf32, #tpu.memory_space<vmem>>, %arg4: memref<3x32x256xf32, #tpu.memory_space<vmem>>, %arg5: memref<1x32xf32, #tpu.memory_space<vmem>>, %arg6: memref<7x32xf32, #tpu.memory_space<vmem>>, %arg7: memref<16x7xf32, #tpu.memory_space<vmem>>, %arg8: memref<16x1xi32, #tpu.memory_space<vmem>>) attributes {dimension_semantics = [], scalar_prefetch = 0 : i64, scratch_operands = 0 : i64, tpu.core_type = #tpu.core_type<tc>} {
    %c0 = arith.constant 0 : index
    %c0_0 = arith.constant 0 : index
    %0 = vector.load %arg3[%c0, %c0_0] : memref<16x256xf32, #tpu.memory_space<vmem>>, vector<16x256xf32>
    %cst = arith.constant 5.000000e-01 : f32
    %1 = vector.broadcast %cst : f32 to vector<16x256xf32>
    %2 = arith.cmpf ogt, %0, %1 : vector<16x256xf32>
    %3 = arith.extui %2 : vector<16x256xi1> to vector<16x256xi32>
    %4 = arith.sitofp %3 : vector<16x256xi32> to vector<16x256xf32>
    %cst_1 = arith.constant dense<0.000000e+00> : vector<16xf32>
    %5 = vector.multi_reduction <add>, %4, %cst_1 [1] : vector<16x256xf32> to vector<16xf32>
    %6 = vector.shape_cast %5 : vector<16xf32> to vector<16x1xf32>
    %cst_2 = arith.constant 0.000000e+00 : f32
    %7 = vector.broadcast %cst_2 : f32 to vector<16x1xf32>
    %8 = arith.cmpf ogt, %6, %7 : vector<16x1xf32>
    %9 = arith.extui %8 : vector<16x1xi1> to vector<16x1xi32>
    %c0_3 = arith.constant 0 : index
    %c0_4 = arith.constant 0 : index
    %10 = vector.load %arg8[%c0_3, %c0_4] : memref<16x1xi32, #tpu.memory_space<vmem>>, vector<16x1xi32>
    tpu.vector_store %arg8[%c0_3, %c0_4], %9 {strides = array<i32>} : memref<16x1xi32, #tpu.memory_space<vmem>>, vector<16x1xi32>,
    %cst_5 = arith.constant 0.000000e+00 : f32
    %11 = vector.broadcast %cst_5 : f32 to vector<32x256xf32>
    %c0_6 = arith.constant 0 : index
    %c0_7 = arith.constant 0 : index
    %12 = vector.load %arg2[%c0_6, %c0_7] : memref<3x256xf32, #tpu.memory_space<vmem>>, vector<1x256xf32>
    %c0_8 = arith.constant 0 : index
    %13 = memref.load %arg0[%c0_8] : memref<3xf32, #tpu.memory_space<smem>>
    %14 = vector.broadcast %13 : f32 to vector<1x256xf32>
    %15 = arith.subf %12, %14 : vector<1x256xf32>
    %c0_9 = arith.constant 0 : index
    %16 = memref.load %arg1[%c0_9] : memref<3xf32, #tpu.memory_space<smem>>
    %17 = vector.broadcast %16 : f32 to vector<1x256xf32>
    %18 = arith.mulf %15, %17 : vector<1x256xf32>
    %c0_10 = arith.constant 0 : index
    %c0_11 = arith.constant 0 : index
    %c0_12 = arith.constant 0 : index
    %19 = vector.load %arg4[%c0_10, %c0_11, %c0_12] : memref<3x32x256xf32, #tpu.memory_space<vmem>>, vector<1x32x256xf32>
    %20 = vector.shape_cast %19 : vector<1x32x256xf32> to vector<32x256xf32>
    %21 = vector.broadcast %18 : vector<1x256xf32> to vector<32x256xf32>
    %22 = arith.mulf %21, %20 : vector<32x256xf32>
    %23 = arith.addf %11, %22 : vector<32x256xf32>
    %c1 = arith.constant 1 : index
    %c0_13 = arith.constant 0 : index
    %24 = vector.load %arg2[%c1, %c0_13] : memref<3x256xf32, #tpu.memory_space<vmem>>, vector<1x256xf32>
    %c1_14 = arith.constant 1 : index
    %25 = memref.load %arg0[%c1_14] : memref<3xf32, #tpu.memory_space<smem>>
    %26 = vector.broadcast %25 : f32 to vector<1x256xf32>
    %27 = arith.subf %24, %26 : vector<1x256xf32>
    %c1_15 = arith.constant 1 : index
    %28 = memref.load %arg1[%c1_15] : memref<3xf32, #tpu.memory_space<smem>>
    %29 = vector.broadcast %28 : f32 to vector<1x256xf32>
    %30 = arith.mulf %27, %29 : vector<1x256xf32>
    %c1_16 = arith.constant 1 : index
    %c0_17 = arith.constant 0 : index
    %c0_18 = arith.constant 0 : index
    %31 = vector.load %arg4[%c1_16, %c0_17, %c0_18] : memref<3x32x256xf32, #tpu.memory_space<vmem>>, vector<1x32x256xf32>
    %32 = vector.shape_cast %31 : vector<1x32x256xf32> to vector<32x256xf32>
    %33 = vector.broadcast %30 : vector<1x256xf32> to vector<32x256xf32>
    %34 = arith.mulf %33, %32 : vector<32x256xf32>
    %35 = arith.addf %23, %34 : vector<32x256xf32>
    %c2 = arith.constant 2 : index
    %c0_19 = arith.constant 0 : index
    %36 = vector.load %arg2[%c2, %c0_19] : memref<3x256xf32, #tpu.memory_space<vmem>>, vector<1x256xf32>
    %c2_20 = arith.constant 2 : index
    %37 = memref.load %arg0[%c2_20] : memref<3xf32, #tpu.memory_space<smem>>
    %38 = vector.broadcast %37 : f32 to vector<1x256xf32>
    %39 = arith.subf %36, %38 : vector<1x256xf32>
    %c2_21 = arith.constant 2 : index
    %40 = memref.load %arg1[%c2_21] : memref<3xf32, #tpu.memory_space<smem>>
    %41 = vector.broadcast %40 : f32 to vector<1x256xf32>
    %42 = arith.mulf %39, %41 : vector<1x256xf32>
    %c2_22 = arith.constant 2 : index
    %c0_23 = arith.constant 0 : index
    %c0_24 = arith.constant 0 : index
    %43 = vector.load %arg4[%c2_22, %c0_23, %c0_24] : memref<3x32x256xf32, #tpu.memory_space<vmem>>, vector<1x32x256xf32>
    %44 = vector.shape_cast %43 : vector<1x32x256xf32> to vector<32x256xf32>
    %45 = vector.broadcast %42 : vector<1x256xf32> to vector<32x256xf32>
    %46 = arith.mulf %45, %44 : vector<32x256xf32>
    %47 = arith.addf %35, %46 : vector<32x256xf32>
    %cst_25 = arith.constant dense<0.000000e+00> : vector<16x32xf32>
    %48 = tpu.matmul %4, %47, %cst_25 {dimension_numbers = #tpu.dot_dimension_numbers<[1], [1], [0], [0], [0, 0, 1, 0], [], []>} : vector<16x256xf32>, vector<32x256xf32>, vector<16x32xf32> -> vector<16x32xf32>
    %c0_26 = arith.constant 0 : index
    %c0_27 = arith.constant 0 : index
    %49 = vector.load %arg5[%c0_26, %c0_27] : memref<1x32xf32, #tpu.memory_space<vmem>>, vector<1x32xf32>
    %50 = vector.broadcast %49 : vector<1x32xf32> to vector<16x32xf32>
    %51 = arith.addf %48, %50 : vector<16x32xf32>
    %52 = arith.mulf %51, %51 : vector<16x32xf32>
    %cst_28 = arith.constant dense<0.000000e+00> : vector<16xf32>
    %53 = vector.multi_reduction <add>, %52, %cst_28 [1] : vector<16x32xf32> to vector<16xf32>
    %54 = vector.shape_cast %53 : vector<16xf32> to vector<16x1xf32>
    %cst_29 = arith.constant 1.000000e-24 : f32
    %55 = vector.broadcast %cst_29 : f32 to vector<16x1xf32>
    %56 = arith.maximumf %54, %55 : vector<16x1xf32>
    %57 = math.rsqrt %56 : vector<16x1xf32>
    %58 = vector.broadcast %57 : vector<16x1xf32> to vector<16x32xf32>
    %59 = arith.mulf %51, %58 : vector<16x32xf32>
    %c0_30 = arith.constant 0 : index
    %c0_31 = arith.constant 0 : index
    %60 = vector.load %arg6[%c0_30, %c0_31] : memref<7x32xf32, #tpu.memory_space<vmem>>, vector<7x32xf32>
    %61 = arith.mulf %60, %60 : vector<7x32xf32>
    %cst_32 = arith.constant dense<0.000000e+00> : vector<7xf32>
    %62 = vector.multi_reduction <add>, %61, %cst_32 [1] : vector<7x32xf32> to vector<7xf32>
    %63 = vector.shape_cast %62 : vector<7xf32> to vector<7x1xf32>
    %cst_33 = arith.constant 1.000000e-24 : f32
    %64 = vector.broadcast %cst_33 : f32 to vector<7x1xf32>
    %65 = arith.maximumf %63, %64 : vector<7x1xf32>
    %66 = math.rsqrt %65 : vector<7x1xf32>
    %67 = vector.broadcast %66 : vector<7x1xf32> to vector<7x32xf32>
    %68 = arith.mulf %60, %67 : vector<7x32xf32>
    %cst_34 = arith.constant dense<0.000000e+00> : vector<16x7xf32>
    %69 = tpu.matmul %59, %68, %cst_34 {dimension_numbers = #tpu.dot_dimension_numbers<[1], [1], [0], [0], [0, 0, 1, 0], [], []>} : vector<16x32xf32>, vector<7x32xf32>, vector<16x7xf32> -> vector<16x7xf32>
    %cst_35 = arith.constant 1.000000e+02 : f32
    %70 = vector.broadcast %cst_35 : f32 to vector<16x7xf32>
    %71 = arith.mulf %70, %69 : vector<16x7xf32>
    %c0_36 = arith.constant 0 : index
    %c0_37 = arith.constant 0 : index
    %72 = vector.load %arg7[%c0_36, %c0_37] : memref<16x7xf32, #tpu.memory_space<vmem>>, vector<16x7xf32>
    tpu.vector_store %arg7[%c0_36, %c0_37], %71 {strides = array<i32>} : memref<16x7xf32, #tpu.memory_space<vmem>>, vector<16x7xf32>,
    return
  }
}

</mosaic_0001>

<llo_original>
// kernel: maskformer_clip_adapter_forward.1
$region0: #{maskformer_clip_adapter_forward.1}
  #allocation0 [shape = 'u32[]', space=smem, size = 0x4, offset = 0x4, fixed_abs, tag = 'smem constant byte address 0x4 - core index']
  #allocation1 [shape = 'u32[144,128]{1,0:T(1,128)}', space=vmem, size = 0x12000, scoped, tag = 'internal scratch']
  %s0 = inlined_call_operand.vmem [shape: f32[3], index: 0, kind: input, shape index: {}]
  %s1 = inlined_call_operand.vmem [shape: f32[3], index: 1, kind: input, shape index: {}]
  %s2 = inlined_call_operand.vmem [shape: f32[3,256], index: 2, kind: input, shape index: {}]
  %s3 = inlined_call_operand.vmem [shape: f32[16,256], index: 3, kind: input, shape index: {}]
  %s4 = inlined_call_operand.vmem [shape: f32[3,32,256], index: 4, kind: input, shape index: {}]
  %s5 = inlined_call_operand.vmem [shape: f32[1,32], index: 5, kind: input, shape index: {}]
  %s6 = inlined_call_operand.vmem [shape: f32[7,32], index: 6, kind: input, shape index: {}]
  %s7 = inlined_call_operand.vmem [shape: f32[16,7], index: 7, kind: output, shape index: {0}]
  %s8 = inlined_call_operand.vmem [shape: s32[16,1], index: 8, kind: output, shape index: {1}]
  %9 = xla_tuple %s7, %s8
  %s10 = sld [smem:[#allocation0]]
  $region54: #{maskformer_clip_adapter_forward.1} parent=0
    _
  %s12 = ssub.s32 1, %s10
  %s13 = scalar_select 0, %s12, %s10
  $region1: #{maskformer_clip_adapter_forward.1} parent=0
    #allocation2 [shape = 'u8[512]{0}', space=smem, size = 0x200, scoped, tag = 'input window, operand 0, single buffered']
    #allocation3 [shape = 's32[1]{0}', space=sflag, size = 0x4, scoped, tag = 'scoped memory for maskformer_clip_adapter_forward.1']
    #allocation4 [shape = 'u8[512]{0}', space=smem, size = 0x200, scoped, tag = 'input window, operand 1, single buffered']
    #allocation5 [shape = 's32[1]{0}', space=sflag, size = 0x4, scoped, tag = 'scoped memory for maskformer_clip_adapter_forward.1']
    %14 = vsyncpa [#allocation3], 0
    %15 = vsyncpa [#allocation5], 0
    // Predicated region
    $region2: #{maskformer_clip_adapter_forward.1} parent=1 // pred_check
      _
    $region3: #{maskformer_clip_adapter_forward.1} parent=1 // pred_check_branch
      %17 = sbr.rel (0) target = $region5
    $region4: #{maskformer_clip_adapter_forward.1} parent=1 // pred_region
      %s19 = ssub.s32 16, 16
      %20 = vsyncadd [#allocation3], %s19
      %s22 = sshll.u32 %s0, 4
      %s23 = int_to_ptr.vmem [resolvable:$true] %s22
      %25 = dma.vmem_to_smem %s23, 16, [#allocation2], [#allocation3]
    $region5: #{maskformer_clip_adapter_forward.1} parent=1 // pred_fallthru
      _
    // Predicated region
    $region6: #{maskformer_clip_adapter_forward.1} parent=1 // pred_check
      _
    $region7: #{maskformer_clip_adapter_forward.1} parent=1 // pred_check_branch
      %27 = sbr.rel (0) target = $region9
    $region8: #{maskformer_clip_adapter_forward.1} parent=1 // pred_region
      %s29 = ssub.s32 16, 16
      %30 = vsyncadd [#allocation5], %s29
      %s32 = sshll.u32 %s1, 4
      %s33 = int_to_ptr.vmem [resolvable:$true] %s32
      %35 = dma.vmem_to_smem %s33, 16, [#allocation4], [#allocation5]
    $region9: #{maskformer_clip_adapter_forward.1} parent=1 // pred_fallthru
      _
    // Predicated region
    $region10: #{maskformer_clip_adapter_forward.1} parent=1 // pred_check
      _
    $region11: #{maskformer_clip_adapter_forward.1} parent=1 // pred_check_branch
      %37 = sbr.rel (0) target = $region13
    $region12: #{maskformer_clip_adapter_forward.1} parent=1 // pred_region
      _
    $region13: #{maskformer_clip_adapter_forward.1} parent=1 // pred_fallthru
      _
    // Predicated region
    $region14: #{maskformer_clip_adapter_forward.1} parent=1 // pred_check
      _
    $region15: #{maskformer_clip_adapter_forward.1} parent=1 // pred_check_branch
      %39 = sbr.rel (0) target = $region17
    $region16: #{maskformer_clip_adapter_forward.1} parent=1 // pred_region
      _
    $region17: #{maskformer_clip_adapter_forward.1} parent=1 // pred_fallthru
      _
    // Predicated region
    $region18: #{maskformer_clip_adapter_forward.1} parent=1 // pred_check
      _
    $region19: #{maskformer_clip_adapter_forward.1} parent=1 // pred_check_branch
      %41 = sbr.rel (0) target = $region21
    $region20: #{maskformer_clip_adapter_forward.1} parent=1 // pred_region
      _
    $region21: #{maskformer_clip_adapter_forward.1} parent=1 // pred_fallthru
      _
    // Predicated region
    $region22: #{maskformer_clip_adapter_forward.1} parent=1 // pred_check
      _
    $region23: #{maskformer_clip_adapter_forward.1} parent=1 // pred_check_branch
      %43 = sbr.rel (0) target = $region25
    $region24: #{maskformer_clip_adapter_forward.1} parent=1 // pred_region
      _
    $region25: #{maskformer_clip_adapter_forward.1} parent=1 // pred_fallthru
      _
    // Predicated region
    $region26: #{maskformer_clip_adapter_forward.1} parent=1 // pred_check
      _
    $region27: #{maskformer_clip_adapter_forward.1} parent=1 // pred_check_branch
      %45 = sbr.rel (0) target = $region29
    $region28: #{maskformer_clip_adapter_forward.1} parent=1 // pred_region
      _
    $region29: #{maskformer_clip_adapter_forward.1} parent=1 // pred_fallthru
      _
    // Predicated region
    $region30: #{maskformer_clip_adapter_forward.1} parent=1 // pred_check
      _
    $region31: #{maskformer_clip_adapter_forward.1} parent=1 // pred_check_branch
      %47 = sbr.rel (0) target = $region33
    $region32: #{maskformer_clip_adapter_forward.1} parent=1 // pred_region
      %48 = dma.done [#allocation3], 16
    $region33: #{maskformer_clip_adapter_forward.1} parent=1 // pred_fallthru
      _
    // Predicated region
    $region34: #{maskformer_clip_adapter_forward.1} parent=1 // pred_check
      _
    $region35: #{maskformer_clip_adapter_forward.1} parent=1 // pred_check_branch
      %50 = sbr.rel (0) target = $region37
    $region36: #{maskformer_clip_adapter_forward.1} parent=1 // pred_region
      %51 = dma.done [#allocation5], 16
    $region37: #{maskformer_clip_adapter_forward.1} parent=1 // pred_fallthru
      _
    %52 = sfence
    %v53 = vld [vmem:[%s3] sm:$0xff]
    %v54 = vld [vmem:[%s3 + $0x8] sm:$0xff]
    %v55 = vld [vmem:[%s3 + $0x10] sm:$0xff]
    %v56 = vld [vmem:[%s3 + $0x18] sm:$0xff]
    %vm57 = vcmp.gt.f32.partialorder %v53, 0.5
    %vm58 = vcmp.gt.f32.partialorder %v54, 0.5
    %vm59 = vcmp.gt.f32.partialorder %v55, 0.5
    %vm60 = vcmp.gt.f32.partialorder %v56, 0.5
    %v61 = vsel %vm57, 1, 0
    %v62 = vsel %vm58, 1, 0
    %v63 = vsel %vm59, 1, 0
    %v64 = vsel %vm60, 1, 0
    %v65 = vcvt.s32.f32 %v61
    %v66 = vcvt.s32.f32 %v62
    %v67 = vcvt.s32.f32 %v63
    %v68 = vcvt.s32.f32 %v64
    %v69 = vadd.f32 %v65, %v66
    %70 = vadd.xlane.f32.xlu0 %v69
    %v71 = vpop.xlane.xlu0 %70
    %v72 = vadd.f32 %v67, %v68
    %73 = vadd.xlane.f32.xlu0 %v72
    %v74 = vpop.xlane.xlu0 %73
    %vm75 = vcmp.gt.f32.partialorder %v71, 0.0
    %vm76 = vcmp.gt.f32.partialorder %v74, 0.0
    %v77 = vsel %vm75, 1, 0
    %v78 = vsel %vm76, 1, 0
    %vm79 = vcmask 7168
    %80 = vst.msk [vmem:[%s8] sm:$0xff] %vm79, %v77
    %81 = vst.msk [vmem:[%s8 + $0x8] sm:$0xff] %vm79, %v78
    %v82 = vld [vmem:[%s2] ss:$4 sm:$0x3]
    %s83 = sld [smem:[#allocation2]]
    %v84 = vstv %s83
    %v85 = vsub.f32 %v82, %v84
    %s86 = sld [smem:[#allocation4]]
    %v87 = vstv %s86
    %v88 = vmul.f32 %v85, %v87
    %v89 = vld [vmem:[%s4] sm:$0xff]
    %v90 = vld [vmem:[%s4 + $0x8] sm:$0xff]
    %v91 = vld [vmem:[%s4 + $0x10] sm:$0xff]
    %v92 = vld [vmem:[%s4 + $0x18] sm:$0xff]
    %v93 = vld [vmem:[%s4 + $0x20] sm:$0xff]
    %v94 = vld [vmem:[%s4 + $0x28] sm:$0xff]
    %v95 = vld [vmem:[%s4 + $0x30] sm:$0xff]
    %v96 = vld [vmem:[%s4 + $0x38] sm:$0xff]
    %v98 = vlaneseq
    %v99 = vshrl.u32 %v98, 7
    %v100 = vsub.s32 0, %v99
    %v101 = vrot.slane %v88, %v100
    %v102 = vlaneseq
    %v103 = vshrl.u32 %v102, 7
    %v104 = vsub.s32 1, %v103
    %v105 = vrot.slane %v88, %v104
    %v108 = vmul.f32 %v101, %v89
    %v109 = vmul.f32 %v105, %v90
    %v110 = vmul.f32 %v101, %v91
    %v111 = vmul.f32 %v105, %v92
    %v112 = vmul.f32 %v101, %v93
    %v113 = vmul.f32 %v105, %v94
    %v114 = vmul.f32 %v101, %v95
    %v115 = vmul.f32 %v105, %v96
    %v116 = vadd.f32 %v108, 0.0
    %v117 = vadd.f32 %v109, 0.0
    %v118 = vadd.f32 %v110, 0.0
    %v119 = vadd.f32 %v111, 0.0
    %v120 = vadd.f32 %v112, 0.0
    %v121 = vadd.f32 %v113, 0.0
    %v122 = vadd.f32 %v114, 0.0
    %v123 = vadd.f32 %v115, 0.0
    %s124 = scalar_lea.vmem %s2, 1
    %v125 = vld [vmem:[%s124] ss:$4 sm:$0x3]
    %s126 = sld [smem:[#allocation2 + $0x1]]
    %v127 = vstv %s126
    %v128 = vsub.f32 %v125, %v127
    %s129 = sld [smem:[#allocation4 + $0x1]]
    %v130 = vstv %s129
    %v131 = vmul.f32 %v128, %v130
    %s132 = scalar_lea.vmem %s4, 64
    %v133 = vld [vmem:[%s132] sm:$0xff]
    %v134 = vld [vmem:[%s132 + $0x8] sm:$0xff]
    %v135 = vld [vmem:[%s132 + $0x10] sm:$0xff]
    %v136 = vld [vmem:[%s132 + $0x18] sm:$0xff]
    %v137 = vld [vmem:[%s132 + $0x20] sm:$0xff]
    %v138 = vld [vmem:[%s132 + $0x28] sm:$0xff]
    %v139 = vld [vmem:[%s132 + $0x30] sm:$0xff]
    %v140 = vld [vmem:[%s132 + $0x38] sm:$0xff]
    %v142 = vlaneseq
    %v143 = vshrl.u32 %v142, 7
    %v144 = vsub.s32 0, %v143
    %v145 = vrot.slane %v131, %v144
    %v146 = vlaneseq
    %v147 = vshrl.u32 %v146, 7
    %v148 = vsub.s32 1, %v147
    %v149 = vrot.slane %v131, %v148
    %v152 = vmul.f32 %v145, %v133
    %v153 = vmul.f32 %v149, %v134
    %v154 = vmul.f32 %v145, %v135
    %v155 = vmul.f32 %v149, %v136
    %v156 = vmul.f32 %v145, %v137
    %v157 = vmul.f32 %v149, %v138
    %v158 = vmul.f32 %v145, %v139
    %v159 = vmul.f32 %v149, %v140
    %v160 = vadd.f32 %v116, %v152
    %v161 = vadd.f32 %v117, %v153
    %v162 = vadd.f32 %v118, %v154
    %v163 = vadd.f32 %v119, %v155
    %v164 = vadd.f32 %v120, %v156
    %v165 = vadd.f32 %v121, %v157
    %v166 = vadd.f32 %v122, %v158
    %v167 = vadd.f32 %v123, %v159
    %s168 = scalar_lea.vmem %s2, 2
    %v169 = vld [vmem:[%s168] ss:$4 sm:$0x3]
    %s170 = sld [smem:[#allocation2 + $0x2]]
    %v171 = vstv %s170
    %v172 = vsub.f32 %v169, %v171
    %s173 = sld [smem:[#allocation4 + $0x2]]
    %v174 = vstv %s173
    %v175 = vmul.f32 %v172, %v174
    %s176 = scalar_lea.vmem %s4, 128
    %v177 = vld [vmem:[%s176] sm:$0xff]
    %v178 = vld [vmem:[%s176 + $0x8] sm:$0xff]
    %v179 = vld [vmem:[%s176 + $0x10] sm:$0xff]
    %v180 = vld [vmem:[%s176 + $0x18] sm:$0xff]
    %v181 = vld [vmem:[%s176 + $0x20] sm:$0xff]
    %v182 = vld [vmem:[%s176 + $0x28] sm:$0xff]
    %v183 = vld [vmem:[%s176 + $0x30] sm:$0xff]
    %v184 = vld [vmem:[%s176 + $0x38] sm:$0xff]
    %v186 = vlaneseq
    %v187 = vshrl.u32 %v186, 7
    %v188 = vsub.s32 0, %v187
    %v189 = vrot.slane %v175, %v188
    %v190 = vlaneseq
    %v191 = vshrl.u32 %v190, 7
    %v192 = vsub.s32 1, %v191
    %v193 = vrot.slane %v175, %v192
    %v196 = vmul.f32 %v189, %v177
    %v197 = vmul.f32 %v193, %v178
    %v198 = vmul.f32 %v189, %v179
    %v199 = vmul.f32 %v193, %v180
    %v200 = vmul.f32 %v189, %v181
    %v201 = vmul.f32 %v193, %v182
    %v202 = vmul.f32 %v189, %v183
    %v203 = vmul.f32 %v193, %v184
    %v204 = vadd.f32 %v160, %v196
    %v205 = vadd.f32 %v161, %v197
    %v206 = vadd.f32 %v162, %v198
    %v207 = vadd.f32 %v163, %v199
    %v208 = vadd.f32 %v164, %v200
    %v209 = vadd.f32 %v165, %v201
    %v210 = vadd.f32 %v166, %v202
    %v211 = vadd.f32 %v167, %v203
    %v212 = vld [vmem:[%s5] sm:$0x1]
    %v214 = vlaneseq
    %v215 = vshrl.u32 %v214, 7
    %v216 = vsub.s32 0, %v215
    %v217 = vrot.slane %v212, %v216
    %219 = vmatprep.subr.mxu0 %v205
    %220 = vmatpush1.xpose.msra.mxu0 %v204
    %221 = vmatprep.subr.mxu0 %v207
    %222 = vmatpush1.xpose.msra.mxu0 %v206
    %223 = vmatprep.subr.mxu0 %v209
    %224 = vmatpush1.xpose.msra.mxu0 %v208
    %225 = vmatprep.subr.mxu0 %v211
    %226 = vmatpush1.xpose.msra.mxu0 %v210
    %227 = vmatprep.subr.mxu0 0.0
    %228 = vmatpush1.xpose.msra.mxu0 0.0
    %229 = vmatprep.subr.mxu0 0.0
    %230 = vmatpush1.xpose.msra.mxu0 0.0
    %231 = vmatprep.subr.mxu0 0.0
    %232 = vmatpush1.xpose.msra.mxu0 0.0
    %233 = vmatprep.subr.mxu0 0.0
    %234 = vmatpush1.xpose.msra.mxu0 0.0
    %235 = vmatprep.subr.mxu0 0.0
    %236 = vmatpush1.xpose.msra.mxu0 0.0
    %237 = vmatprep.subr.mxu0 0.0
    %238 = vmatpush1.xpose.msra.mxu0 0.0
    %239 = vmatprep.subr.mxu0 0.0
    %240 = vmatpush1.xpose.msra.mxu0 0.0
    %241 = vmatprep.subr.mxu0 0.0
    %242 = vmatpush1.xpose.msra.mxu0 0.0
    %243 = vmatprep.subr.mxu0 0.0
    %244 = vmatpush1.xpose.msra.mxu0 0.0
    %245 = vmatprep.subr.mxu0 0.0
    %246 = vmatpush1.xpose.msra.mxu0 0.0
    %247 = vmatprep.subr.mxu0 0.0
    %248 = vmatpush1.xpose.msra.mxu0 0.0
    %249 = vmatprep.subr.mxu0 0.0
    %250 = vmatpush1.xpose.msra.mxu0 0.0
    %251 = vmatprep.subr.mxu0 0.0
    %252 = vmatpush1.xpose.msra.mxu0 0.0
    %253 = vmatprep.subr.mxu0 0.0
    %254 = vmatpush1.xpose.msra.mxu0 0.0
    %255 = vmatprep.subr.mxu0 0.0
    %256 = vmatpush1.xpose.msra.mxu0 0.0
    %257 = vmatprep.subr.mxu0 0.0
    %258 = vmatpush1.xpose.msra.mxu0 0.0
    %259 = vmatprep.subr.mxu0 0.0
    %260 = vmatpush1.xpose.msra.mxu0 0.0
    %261 = vmatprep.subr.mxu0 0.0
    %262 = vmatpush1.xpose.msra.mxu0 0.0
    %263 = vmatprep.subr.mxu0 0.0
    %264 = vmatpush1.xpose.msra.mxu0 0.0
    %265 = vmatprep.subr.mxu0 0.0
    %266 = vmatpush1.xpose.msra.mxu0 0.0
    %267 = vmatprep.subr.mxu0 0.0
    %268 = vmatpush1.xpose.msra.mxu0 0.0
    %269 = vmatprep.subr.mxu0 0.0
    %270 = vmatpush1.xpose.msra.mxu0 0.0
    %271 = vmatprep.subr.mxu0 0.0
    %272 = vmatpush1.xpose.msra.mxu0 0.0
    %273 = vmatprep.subr.mxu0 0.0
    %274 = vmatpush1.xpose.msra.mxu0 0.0
    %275 = vmatprep.subr.mxu0 0.0
    %276 = vmatpush1.xpose.msra.mxu0 0.0
    %277 = vmatprep.subr.mxu0 0.0
    %278 = vmatpush1.xpose.msra.mxu0 0.0
    %279 = vmatprep.subr.mxu0 0.0
    %280 = vmatpush1.xpose.msra.mxu0 0.0
    %281 = vmatprep.subr.mxu0 0.0
    %282 = vmatpush1.xpose.msra.mxu0 0.0
    %283 = vmatprep.mubr.f32.mxu0 %v66
    %284 = vmatmul.mubr.f32.gmra.mrb[0].mxu0 %v65
    %v285 = vpop.f32.mrb[0].mxu0
    %v286 = vadd.f32 %v217, %v285
    %v287 = vpop.f32.mrb[0].mxu0
    %288 = vmatprep.mubr.f32.mxu0 %v68
    %289 = vmatmul.mubr.f32.gmra.mrb[0].mxu0 %v67
    %v290 = vpop.f32.mrb[0].mxu0
    %v291 = vadd.f32 %v217, %v290
    %v292 = vpop.f32.mrb[0].mxu0
    %293 = vdwg.mxu0
    %v294 = vmul.f32 %v286, %v286
    %v295 = vmul.f32 %v291, %v291
    %vm296 = vcmask 261120
    %v297 = vsel %vm296, %v294, 0.0
    %298 = vadd.xlane.f32.xlu0 %v297
    %v299 = vpop.xlane.xlu0 %298
    %v300 = vsel %vm296, %v295, 0.0
    %301 = vadd.xlane.f32.xlu0 %v300
    %v302 = vpop.xlane.xlu0 %301
    %v303 = vmax.f32 %v299, 1e-24
    %v304 = vmax.f32 %v302, 1e-24
    %v305 = vrsqrt.pop %v303
    %v306 = vrsqrt.pop %v304
    %v307 = vmul.f32 %v286, %v305
    %v308 = vmul.f32 %v291, %v306
    %v309 = vld [vmem:[%s6] sm:$0x7f]
    %v310 = vmul.f32 %v309, %v309
    %vm311 = vcmask 260096
    %v312 = vsel %vm311, %v310, 0.0
    %313 = vadd.xlane.f32.xlu0 %v312
    %v314 = vpop.xlane.xlu0 %313
    %v315 = vmax.f32 %v314, 1e-24
    %v316 = vrsqrt.pop %v315
    %v317 = vmul.f32 %v309, %v316
    %v319 = vsel %vm296, %v307, 0
    %v322 = vsel %vm296, %v308, 0
    %v325 = vsel %vm296, %v317, 0
    %327 = vmatprep.subr.mxu0 0.0
    %328 = vmatpush1.xpose.msra.mxu0 %v325
    %329 = vmatprep.subr.mxu0 0.0
    %330 = vmatpush1.xpose.msra.mxu0 0.0
    %331 = vmatprep.subr.mxu0 0.0
    %332 = vmatpush1.xpose.msra.mxu0 0.0
    %333 = vmatprep.subr.mxu0 0.0
    %334 = vmatpush1.xpose.msra.mxu0 0.0
    %335 = vmatprep.subr.mxu0 0.0
    %336 = vmatpush1.xpose.msra.mxu0 0.0
    %337 = vmatprep.subr.mxu0 0.0
    %338 = vmatpush1.xpose.msra.mxu0 0.0
    %339 = vmatprep.subr.mxu0 0.0
    %340 = vmatpush1.xpose.msra.mxu0 0.0
    %341 = vmatprep.subr.mxu0 0.0
    %342 = vmatpush1.xpose.msra.mxu0 0.0
    %343 = vmatprep.subr.mxu0 0.0
    %344 = vmatpush1.xpose.msra.mxu0 0.0
    %345 = vmatprep.subr.mxu0 0.0
    %346 = vmatpush1.xpose.msra.mxu0 0.0
    %347 = vmatprep.subr.mxu0 0.0
    %348 = vmatpush1.xpose.msra.mxu0 0.0
    %349 = vmatprep.subr.mxu0 0.0
    %350 = vmatpush1.xpose.msra.mxu0 0.0
    %351 = vmatprep.subr.mxu0 0.0
    %352 = vmatpush1.xpose.msra.mxu0 0.0
    %353 = vmatprep.subr.mxu0 0.0
    %354 = vmatpush1.xpose.msra.mxu0 0.0
    %355 = vmatprep.subr.mxu0 0.0
    %356 = vmatpush1.xpose.msra.mxu0 0.0
    %357 = vmatprep.subr.mxu0 0.0
    %358 = vmatpush1.xpose.msra.mxu0 0.0
    %359 = vmatprep.subr.mxu0 0.0
    %360 = vmatpush1.xpose.msra.mxu0 0.0
    %361 = vmatprep.subr.mxu0 0.0
    %362 = vmatpush1.xpose.msra.mxu0 0.0
    %363 = vmatprep.subr.mxu0 0.0
    %364 = vmatpush1.xpose.msra.mxu0 0.0
    %365 = vmatprep.subr.mxu0 0.0
    %366 = vmatpush1.xpose.msra.mxu0 0.0
    %367 = vmatprep.subr.mxu0 0.0
    %368 = vmatpush1.xpose.msra.mxu0 0.0
    %369 = vmatprep.subr.mxu0 0.0
    %370 = vmatpush1.xpose.msra.mxu0 0.0
    %371 = vmatprep.subr.mxu0 0.0
    %372 = vmatpush1.xpose.msra.mxu0 0.0
    %373 = vmatprep.subr.mxu0 0.0
    %374 = vmatpush1.xpose.msra.mxu0 0.0
    %375 = vmatprep.subr.mxu0 0.0
    %376 = vmatpush1.xpose.msra.mxu0 0.0
    %377 = vmatprep.subr.mxu0 0.0
    %378 = vmatpush1.xpose.msra.mxu0 0.0
    %379 = vmatprep.subr.mxu0 0.0
    %380 = vmatpush1.xpose.msra.mxu0 0.0
    %381 = vmatprep.subr.mxu0 0.0
    %382 = vmatpush1.xpose.msra.mxu0 0.0
    %383 = vmatprep.subr.mxu0 0.0
    %384 = vmatpush1.xpose.msra.mxu0 0.0
    %385 = vmatprep.subr.mxu0 0.0
    %386 = vmatpush1.xpose.msra.mxu0 0.0
    %387 = vmatprep.subr.mxu0 0.0
    %388 = vmatpush1.xpose.msra.mxu0 0.0
    %389 = vmatprep.subr.mxu0 0.0
    %390 = vmatpush1.xpose.msra.mxu0 0.0
    %391 = vmatprep.mubr.f32.mxu0 0.0
    %392 = vmatmul.mubr.f32.gmra.mrb[0].mxu0 %v319
    %v393 = vpop.f32.mrb[0].mxu0
    %v394 = vadd.f32 0.0, %v393
    %v395 = vpop.f32.mrb[0].mxu0
    %396 = vmatprep.mubr.f32.mxu0 0.0
    %397 = vmatmul.mubr.f32.gmra.mrb[0].mxu0 %v322
    %v398 = vpop.f32.mrb[0].mxu0
    %v399 = vadd.f32 0.0, %v398
    %v400 = vpop.f32.mrb[0].mxu0
    %401 = vdwg.mxu0
    %v402 = vmul.f32 %v394, 100.0
    %v403 = vmul.f32 %v399, 100.0
    %vm404 = vcmask 56320
    %405 = vst.msk [vmem:[%s7] sm:$0xff] %vm404, %v402
    %406 = vst.msk [vmem:[%s7 + $0x8] sm:$0xff] %vm404, %v403
    // Predicated region
    $region38: #{maskformer_clip_adapter_forward.1} parent=1 // pred_check
      _
    $region39: #{maskformer_clip_adapter_forward.1} parent=1 // pred_check_branch
      %408 = sbr.rel (0) target = $region41
    $region40: #{maskformer_clip_adapter_forward.1} parent=1 // pred_region
      _
    $region41: #{maskformer_clip_adapter_forward.1} parent=1 // pred_fallthru
      _
    // Predicated region
    $region42: #{maskformer_clip_adapter_forward.1} parent=1 // pred_check
      _
    $region43: #{maskformer_clip_adapter_forward.1} parent=1 // pred_check_branch
      %410 = sbr.rel (0) target = $region45
    $region44: #{maskformer_clip_adapter_forward.1} parent=1 // pred_region
      _
    $region45: #{maskformer_clip_adapter_forward.1} parent=1 // pred_fallthru
      _
    // Predicated region
    $region46: #{maskformer_clip_adapter_forward.1} parent=1 // pred_check
      _
    $region47: #{maskformer_clip_adapter_forward.1} parent=1 // pred_check_branch
      %412 = sbr.rel (0) target = $region49
    $region48: #{maskformer_clip_adapter_forward.1} parent=1 // pred_region
      _
    $region49: #{maskformer_clip_adapter_forward.1} parent=1 // pred_fallthru
      _
    // Predicated region
    $region50: #{maskformer_clip_adapter_forward.1} parent=1 // pred_check
      _
    $region51: #{maskformer_clip_adapter_forward.1} parent=1 // pred_check_branch
      %414 = sbr.rel (0) target = $region53
    $region52: #{maskformer_clip_adapter_forward.1} parent=1 // pred_region
      _
    $region53: #{maskformer_clip_adapter_forward.1} parent=1 // pred_fallthru
      _
    %415 = vsyncpa [#allocation3], 1
    %416 = vsyncpa [#allocation5], 1

</llo_original>
